<compile_context>
chip_gen: v7x
topology: tpu7x:2x2x1
jax: 0.10.0
libtpu: 0.0.40
codegen_flags: <defaults>
</compile_context>

<pallas_src>
import jax
import jax.numpy as jnp
from jax.experimental import pallas as pl
from jax.experimental.pallas import tpu as pltpu

_NCORES = 2  # megacore split on v7x; degenerates to a serial loop on 1-TC chips


def _vmem_budget_bytes() -> int:
    """Per-core scoped-VMEM limit derived from the running TPU generation."""
    try:
        cap = int(pltpu.get_tpu_info().vmem_capacity_bytes)
    except Exception:
        cap = 64 << 20  # conservative fallback (v7x per-TC VMEM size)
    # ~75% of physical, capped at 96 MiB (128 MiB on v5e/v6e, 64 MiB on v7x).
    return int(min((cap * 3) // 4, 96 << 20))


def continuity_loss(x, target, stepsize_con: float = 1.0):
    """Pallas ContinuityLoss.forward with initial_loss = L1 (mean)."""
    assert x.shape == target.shape and x.ndim == 4
    B, C, H, W = x.shape
    N = B * C
    P = H * W

    xf = x.reshape(N, P)
    tf = target.reshape(N, P)
    itemsize = xf.dtype.itemsize

    vmem_limit = _vmem_budget_bytes()

    # Planes (rows) per grid step.  Per-row VMEM working set:
    #   2 inputs x 2 pipeline buffers (native dtype) + ~6 f32 block temporaries
    #   (upcasts, two rolls, three |diff| arrays before the group-sum).
    bytes_per_row = 4 * P * itemsize + 6 * P * 4
    tbc = (vmem_limit // bytes_per_row) // 8 * 8
    if tbc < 8:
        # TODO(synk): tile the plane (lane) axis with a W-column halo for the
        # rolls when even an 8-row block no longer fits VMEM (very large H*W).
        raise ValueError(
            f"plane of {P} elements too large for a single VMEM block "
            f"(limit {vmem_limit} bytes); plane-axis tiling not implemented")
    n8 = ((N + 7) // 8) * 8
    tbc = int(min(tbc, n8))

    num_chunks = -(-N // tbc)
    rows_padded = num_chunks * tbc
    if rows_padded != N:
        # Zero planes contribute exactly 0 to all three sums, so no in-kernel
        # row mask is needed (copy cost only for ragged inputs).
        xf = jnp.pad(xf, ((0, rows_padded - N), (0, 0)))
        tf = jnp.pad(tf, ((0, rows_padded - N), (0, 0)))

    cpc = -(-num_chunks // _NCORES)  # chunks per core

    # 1/(N*H*W) is applied once to the final scalar; the continuity terms only
    # carry their denominator *ratio* inside the lane masks, so the inner loop
    # has no per-element scaling at all.
    w_l1 = 1.0 / float(N * H * W)
    # H==1 / W==1: PyTorch's mean over an empty diff is NaN; nan-weights keep that.
    r_v = float(stepsize_con) * (H / (H - 1) if H > 1 else float("nan"))
    r_h = float(stepsize_con) * (W / (W - 1) if W > 1 else float("nan"))

    pos = jnp.arange(P)
    mask_h = (r_h * (pos % W != W - 1)).astype(jnp.float32)   # lhpz (j+1 valid)
    mask_v = (r_v * (pos < (H - 1) * W)).astype(jnp.float32)  # lhpy (j+W valid)
    a_h = jnp.tile(mask_h[None, :], (8, 1))                   # (8, P): no in-kernel broadcast
    a_v = jnp.tile(mask_v[None, :], (8, 1))

    groups = tbc // 8

    def kernel(ah_ref, av_ref, x_ref, t_ref, out_ref, acc_ref):
        c = pl.program_id(0)          # core axis  (parallel)
        i = pl.program_id(1)          # chunk axis (arbitrary / reduction)
        chunk = c * cpc + i

        @pl.when(i == 0)
        def _init():
            acc_ref[...] = jnp.zeros_like(acc_ref)

        # Skip the duplicated phantom step(s) of the core-padded grid.
        @pl.when(chunk < num_chunks)
        def _accumulate():
            xv = x_ref[...].astype(jnp.float32)       # (tbc, P), upcast in-register
            tv = t_ref[...].astype(jnp.float32)

            # Neighbour values via XLU lane rotation; wrapped positions are
            # zeroed by the lane masks applied after the group-sum.
            x_right = pltpu.roll(xv, P - 1, 1)        # x[:, (j + 1) % P]
            x_down = pltpu.roll(xv, P - W, 1)         # x[:, (j + W) % P]

            d_l1 = jnp.abs(xv - tv)
            d_h = jnp.abs(x_right - xv)
            d_v = jnp.abs(x_down - xv)

            # Collapse the tbc rows to one (8, P) sublane tile with plain VALU
            # adds; the weighted masks touch only the small reduced partials.
            s_l1 = jnp.sum(d_l1.reshape(groups, 8, P), axis=0)
            s_h = jnp.sum(d_h.reshape(groups, 8, P), axis=0)
            s_v = jnp.sum(d_v.reshape(groups, 8, P), axis=0)
            acc_ref[...] += s_l1 + ah_ref[...] * s_h + av_ref[...] * s_v

        # Single cross-lane reduction per core, on its last step only.
        @pl.when(i == cpc - 1)
        def _finalize():
            out_ref[...] = jnp.full((1, 8, 128), jnp.sum(acc_ref[...]),
                                    jnp.float32)

    def plane_map(c, i):
        # Clamp so the phantom core-padding step never DMAs out of bounds; its
        # contribution is skipped by the pl.when above.
        return (jnp.minimum(c * cpc + i, num_chunks - 1), 0)

    partials = pl.pallas_call(
        kernel,
        out_shape=jax.ShapeDtypeStruct((_NCORES, 8, 128), jnp.float32),
        grid_spec=pltpu.PrefetchScalarGridSpec(
            num_scalar_prefetch=0,
            grid=(_NCORES, cpc),
            in_specs=[
                pl.BlockSpec((8, P), lambda c, i: (0, 0)),      # a_h (resident)
                pl.BlockSpec((8, P), lambda c, i: (0, 0)),      # a_v (resident)
                pl.BlockSpec((tbc, P), plane_map),              # x
                pl.BlockSpec((tbc, P), plane_map),              # target
            ],
            out_specs=pl.BlockSpec((1, 8, 128), lambda c, i: (c, 0, 0)),
            scratch_shapes=[pltpu.VMEM((8, P), jnp.float32)],
        ),
        # TODO(synk): on v7x confirm the core axis really shards across both
        # TensorCores (switch to pltpu.CORE_PARALLEL if "parallel" does not).
        compiler_params=pltpu.CompilerParams(
            dimension_semantics=("parallel", "arbitrary"),
            vmem_limit_bytes=vmem_limit,
        ),
        cost_estimate=pl.CostEstimate(
            flops=int(9 * rows_padded * P),
            transcendentals=0,
            bytes_accessed=int(2 * rows_padded * P * itemsize),
        ),
    )(a_h, a_v, xf, tf)

    return w_l1 * jnp.sum(partials[:, 0, 0])


def _reference(x, target, stepsize_con: float = 1.0):
    """Pure-JAX reference, same math as the PyTorch module (initial_loss = L1 mean)."""
    x = x.astype(jnp.float32)
    target = target.astype(jnp.float32)
    lhpy = jnp.mean(jnp.abs(x[:, :, 1:, :] - x[:, :, :-1, :]))
    lhpz = jnp.mean(jnp.abs(x[:, :, :, 1:] - x[:, :, :, :-1]))
    initial = jnp.mean(jnp.abs(x - target))
    return initial + stepsize_con * (lhpy + lhpz)


if __name__ == "__main__":
    key = jax.random.PRNGKey(0)
    kx, kt = jax.random.split(key)
    B, C, H, W = 2, 4, 16, 16
    x = jax.random.normal(kx, (B, C, H, W), dtype=jnp.float32)
    target = jax.random.normal(kt, (B, C, H, W), dtype=jnp.float32)

    out = jax.block_until_ready(continuity_loss(x, target, stepsize_con=1.0))
    ref = jax.block_until_ready(_reference(x, target, stepsize_con=1.0))
    assert jnp.allclose(out, ref, rtol=1e-4, atol=1e-4), (out, ref)

    print("KERNEL_OK")
</pallas_src>

<mosaic_0001>
module attributes {stable_mosaic.version = 11 : i64} {
  func.func @kernel(%arg0: i32, %arg1: i32, %arg2: memref<8x256xf32, #tpu.memory_space<vmem>>, %arg3: memref<8x256xf32, #tpu.memory_space<vmem>>, %arg4: memref<8x256xf32, #tpu.memory_space<vmem>>, %arg5: memref<8x256xf32, #tpu.memory_space<vmem>>, %arg6: memref<1x8x128xf32, #tpu.memory_space<vmem>>, %arg7: memref<8x256xf32, #tpu.memory_space<vmem>>) attributes {dimension_semantics = [#tpu.dimension_semantics<parallel>, #tpu.dimension_semantics<arbitrary>], iteration_bounds = array<i64: 2, 1>, scalar_prefetch = 0 : i64, scratch_operands = 1 : i64, tpu.core_type = #tpu.core_type<tc>, window_params = [{pipeline_mode = #tpu.pipeline_mode<synchronous>, transform_indices = @transform_0, window_bounds = array<i64: 8, 256>}, {pipeline_mode = #tpu.pipeline_mode<synchronous>, transform_indices = @transform_1, window_bounds = array<i64: 8, 256>}, {transform_indices = @transform_2, window_bounds = array<i64: 8, 256>}, {transform_indices = @transform_3, window_bounds = array<i64: 8, 256>}, {transform_indices = @transform_4, window_bounds = array<i64: 1, 8, 128>}]} {
    %c1_i32 = arith.constant 1 : i32
    %0 = arith.muli %arg0, %c1_i32 : i32
    %1 = arith.addi %0, %arg1 : i32
    %c0_i32 = arith.constant 0 : i32
    %2 = arith.cmpi eq, %arg1, %c0_i32 : i32
    %3 = arith.extui %2 : i1 to i32
    %c0_i32_0 = arith.constant 0 : i32
    %4 = arith.cmpi ne, %3, %c0_i32_0 : i32
    scf.if %4 {
      %cst = arith.constant 0.000000e+00 : f32
      %11 = vector.broadcast %cst : f32 to vector<8x256xf32>
      %c0 = arith.constant 0 : index
      %c0_5 = arith.constant 0 : index
      %12 = vector.load %arg7[%c0, %c0_5] : memref<8x256xf32, #tpu.memory_space<vmem>>, vector<8x256xf32>
      tpu.vector_store %arg7[%c0, %c0_5], %11 {strides = array<i32>} : memref<8x256xf32, #tpu.memory_space<vmem>>, vector<8x256xf32>,
    } else {
    }
    %c1_i32_1 = arith.constant 1 : i32
    %5 = arith.cmpi slt, %1, %c1_i32_1 : i32
    %6 = arith.extui %5 : i1 to i32
    %c0_i32_2 = arith.constant 0 : i32
    %7 = arith.cmpi ne, %6, %c0_i32_2 : i32
    scf.if %7 {
      %c0 = arith.constant 0 : index
      %c0_5 = arith.constant 0 : index
      %11 = vector.load %arg4[%c0, %c0_5] : memref<8x256xf32, #tpu.memory_space<vmem>>, vector<8x256xf32>
      %c0_6 = arith.constant 0 : index
      %c0_7 = arith.constant 0 : index
      %12 = vector.load %arg5[%c0_6, %c0_7] : memref<8x256xf32, #tpu.memory_space<vmem>>, vector<8x256xf32>
      %c255_i32 = arith.constant 255 : i32
      %13 = tpu.dynamic_rotate %11 by %c255_i32 dim 1 : vector<8x256xf32>, i32 -> vector<8x256xf32>
      %c240_i32 = arith.constant 240 : i32
      %14 = tpu.dynamic_rotate %11 by %c240_i32 dim 1 : vector<8x256xf32>, i32 -> vector<8x256xf32>
      %15 = arith.subf %11, %12 : vector<8x256xf32>
      %16 = math.absf %15 : vector<8x256xf32>
      %17 = arith.subf %13, %11 : vector<8x256xf32>
      %18 = math.absf %17 : vector<8x256xf32>
      %19 = arith.subf %14, %11 : vector<8x256xf32>
      %20 = math.absf %19 : vector<8x256xf32>
      %21 = vector.shape_cast %16 : vector<8x256xf32> to vector<1x8x256xf32>
      %cst = arith.constant dense<0.000000e+00> : vector<8x256xf32>
      %22 = vector.multi_reduction <add>, %21, %cst [0] : vector<1x8x256xf32> to vector<8x256xf32>
      %23 = vector.shape_cast %18 : vector<8x256xf32> to vector<1x8x256xf32>
      %cst_8 = arith.constant dense<0.000000e+00> : vector<8x256xf32>
      %24 = vector.multi_reduction <add>, %23, %cst_8 [0] : vector<1x8x256xf32> to vector<8x256xf32>
      %25 = vector.shape_cast %20 : vector<8x256xf32> to vector<1x8x256xf32>
      %cst_9 = arith.constant dense<0.000000e+00> : vector<8x256xf32>
      %26 = vector.multi_reduction <add>, %25, %cst_9 [0] : vector<1x8x256xf32> to vector<8x256xf32>
      %c0_10 = arith.constant 0 : index
      %c0_11 = arith.constant 0 : index
      %27 = vector.load %arg7[%c0_10, %c0_11] : memref<8x256xf32, #tpu.memory_space<vmem>>, vector<8x256xf32>
      %c0_12 = arith.constant 0 : index
      %c0_13 = arith.constant 0 : index
      %28 = vector.load %arg2[%c0_12, %c0_13] : memref<8x256xf32, #tpu.memory_space<vmem>>, vector<8x256xf32>
      %29 = arith.mulf %28, %24 : vector<8x256xf32>
      %30 = arith.addf %22, %29 : vector<8x256xf32>
      %c0_14 = arith.constant 0 : index
      %c0_15 = arith.constant 0 : index
      %31 = vector.load %arg3[%c0_14, %c0_15] : memref<8x256xf32, #tpu.memory_space<vmem>>, vector<8x256xf32>
      %32 = arith.mulf %31, %26 : vector<8x256xf32>
      %33 = arith.addf %30, %32 : vector<8x256xf32>
      %34 = arith.addf %27, %33 : vector<8x256xf32>
      %c0_16 = arith.constant 0 : index
      %c0_17 = arith.constant 0 : index
      %35 = vector.load %arg7[%c0_16, %c0_17] : memref<8x256xf32, #tpu.memory_space<vmem>>, vector<8x256xf32>
      tpu.vector_store %arg7[%c0_16, %c0_17], %34 {strides = array<i32>} : memref<8x256xf32, #tpu.memory_space<vmem>>, vector<8x256xf32>,
    } else {
    }
    %c0_i32_3 = arith.constant 0 : i32
    %8 = arith.cmpi eq, %arg1, %c0_i32_3 : i32
    %9 = arith.extui %8 : i1 to i32
    %c0_i32_4 = arith.constant 0 : i32
    %10 = arith.cmpi ne, %9, %c0_i32_4 : i32
    scf.if %10 {
      %c0 = arith.constant 0 : index
      %c0_5 = arith.constant 0 : index
      %11 = vector.load %arg7[%c0, %c0_5] : memref<8x256xf32, #tpu.memory_space<vmem>>, vector<8x256xf32>
      %12 = vector.shape_cast %11 : vector<8x256xf32> to vector<1x8x256xf32>
      %cst = arith.constant dense<0.000000e+00> : vector<1xf32>
      %13 = vector.multi_reduction <add>, %12, %cst [1, 2] : vector<1x8x256xf32> to vector<1xf32>
      %14 = vector.shape_cast %13 : vector<1xf32> to vector<1x1x1xf32>
      %15 = vector.extract %14[0, 0, 0] : f32 from vector<1x1x1xf32>
      %16 = vector.broadcast %15 : f32 to vector<1x8x128xf32>
      %c0_6 = arith.constant 0 : index
      %c0_7 = arith.constant 0 : index
      %c0_8 = arith.constant 0 : index
      %17 = vector.load %arg6[%c0_6, %c0_7, %c0_8] : memref<1x8x128xf32, #tpu.memory_space<vmem>>, vector<1x8x128xf32>
      tpu.vector_store %arg6[%c0_6, %c0_7, %c0_8], %16 {strides = array<i32>} : memref<1x8x128xf32, #tpu.memory_space<vmem>>, vector<1x8x128xf32>,
    } else {
    }
    return
  }
  func.func @transform_0(%arg0: i32, %arg1: i32) -> (i32, i32) {
    %c0_i32 = arith.constant 0 : i32
    %c0_i32_0 = arith.constant 0 : i32
    %c0_i32_1 = arith.constant 0 : i32
    return %c0_i32, %c0_i32_0 : i32, i32
  }
  func.func @transform_1(%arg0: i32, %arg1: i32) -> (i32, i32) {
    %c0_i32 = arith.constant 0 : i32
    %c0_i32_0 = arith.constant 0 : i32
    %c0_i32_1 = arith.constant 0 : i32
    return %c0_i32, %c0_i32_0 : i32, i32
  }
  func.func @transform_2(%arg0: i32, %arg1: i32) -> (i32, i32) {
    %c1_i32 = arith.constant 1 : i32
    %0 = arith.muli %arg0, %c1_i32 : i32
    %1 = arith.addi %0, %arg1 : i32
    %c0_i32 = arith.constant 0 : i32
    %2 = arith.minsi %1, %c0_i32 : i32
    %c0_i32_0 = arith.constant 0 : i32
    %c0_i32_1 = arith.constant 0 : i32
    return %2, %c0_i32_0 : i32, i32
  }
  func.func @transform_3(%arg0: i32, %arg1: i32) -> (i32, i32) {
    %c1_i32 = arith.constant 1 : i32
    %0 = arith.muli %arg0, %c1_i32 : i32
    %1 = arith.addi %0, %arg1 : i32
    %c0_i32 = arith.constant 0 : i32
    %2 = arith.minsi %1, %c0_i32 : i32
    %c0_i32_0 = arith.constant 0 : i32
    %c0_i32_1 = arith.constant 0 : i32
    return %2, %c0_i32_0 : i32, i32
  }
  func.func @transform_4(%arg0: i32, %arg1: i32) -> (i32, i32, i32) {
    %c0_i32 = arith.constant 0 : i32
    %c0_i32_0 = arith.constant 0 : i32
    %c0_i32_1 = arith.constant 0 : i32
    return %arg0, %c0_i32, %c0_i32_0 : i32, i32, i32
  }
}

</mosaic_0001>

<llo_original>
// kernel: tpu_custom_call.1
$region0: #{tpu_custom_call.1}
  #allocation0 [shape = 'u32[]', space=smem, size = 0x4, offset = 0x4, fixed_abs, tag = 'smem constant byte address 0x4 - core index']
  #allocation1 [shape = 'u32[144,128]{1,0:T(1,128)}', space=vmem, size = 0x12000, scoped, tag = 'internal scratch']
  #allocation2 [shape = 'f32[8,256]{1,0:T(8,128)}', space=vmem, size = 0x2000, scoped, tag = 'scratch operand']
  %s0 = inlined_call_operand.hbm [shape: f32[8,256], index: 0, kind: input, shape index: {}]
  %s1 = inlined_call_operand.hbm [shape: f32[8,256], index: 1, kind: input, shape index: {}]
  %s2 = inlined_call_operand.hbm [shape: f32[8,256], index: 2, kind: input, shape index: {}]
  %s3 = inlined_call_operand.hbm [shape: f32[8,256], index: 3, kind: input, shape index: {}]
  %s4 = inlined_call_operand.hbm [shape: f32[2,8,128], index: 4, kind: output, shape index: {}]
  %s5 = sld [smem:[#allocation0]]
  $region77: #{tpu_custom_call.1} parent=0
    _
  %s7 = ssub.s32 1, %s5
  %s8 = scalar_select 0, %s7, %s5
  $region1: #{tpu_custom_call.1} parent=0
    #allocation3 [shape = 'u8[8192]{0}', space=vmem, size = 0x2000, scoped, tag = 'input window, operand 0, single buffered']
    #allocation4 [shape = 's32[2]{0}', space=sflag, size = 0x8, scoped, tag = 'scoped memory for tpu_custom_call.1']
    #allocation5 [shape = 's32[2]{0}', space=sflag, size = 0x8, scoped, tag = 'scoped memory for tpu_custom_call.1']
    #allocation6 [shape = 'u8[8192]{0}', space=vmem, size = 0x2000, scoped, tag = 'input window, operand 1, single buffered']
    #allocation7 [shape = 's32[1]{0}', space=sflag, size = 0x4, scoped, tag = 'scoped memory for tpu_custom_call.1']
    #allocation8 [shape = 'u8[16384]{0}', space=vmem, size = 0x4000, scoped, tag = 'input window, operand 2']
    #allocation9 [shape = 'u8[16384]{0}', space=vmem, size = 0x4000, scoped, tag = 'input window, operand 3']
    #allocation10 [shape = 'u8[8192]{0}', space=vmem, size = 0x2000, scoped, tag = 'output window, operand 0']
    %9 = vsyncpa [#allocation4], 0
    %10 = vsyncpa [#allocation7], 0
    %11 = vsyncpa [#allocation5], 0
    %s12 = scalar_lea.sflag [#allocation5], 1
    %13 = vsyncpa %s12, 0
    loop: start=0, step=1, limit=4
    $region2: #{tpu_custom_call.1} parent=1 // loop_pre_header
      _
    $region3: #{tpu_custom_call.1} parent=1 // loop_header
      %s15 = sphi 0, %s19
      %p16 = scmp.ge.s32.totalorder %s15, 4
      %s22 = sphi 0, %s34
      %s23 = sphi 0, %s30
      %s24 = sphi 0, %s22
      %s25 = sphi 0, %s23
      %s26 = sphi 0, %s24
      %s27 = sphi 0, %s25
      %s35 = sphi 0, %s35
      %s37 = sphi 0, %s35
      %s38 = sphi 0, %s37
      %s52 = sphi 0, %s38
      %s56 = sphi 0, %s56
      %s58 = sphi 0, %s56
      %s59 = sphi 0, %s58
      %s73 = sphi 0, %s59
      %s85 = sphi 0, %s87
      %s88 = sphi 0, %s85
      %s89 = sphi 0, %s88
      %s105 = sphi 0, %s89
      %s117 = sphi 0, %s119
      %s120 = sphi 0, %s117
      %s121 = sphi 0, %s120
      %s137 = sphi 0, %s121
      %s143 = sphi 0, %s145
      %s146 = sphi 0, %s143
      %s147 = sphi 0, %s146
      %s163 = sphi 0, %s147
    $region4: #{tpu_custom_call.1} parent=1 // loop_header_branch
      %18 = sbr.rel (%p16) target = $region8
    $region5: #{tpu_custom_call.1} parent=1 // loop_body
      %s20 = ssub.s32 %s15, 1
      %s21 = ssub.s32 %s15, 2
      %s28 = sadd.s32 1, %s23
      %p29 = scmp.ge.s32.totalorder %s28, 1
      %s30 = scalar_select %p29, 0, %s28
      %s31 = sadd.s32 1, %s22
      %s32 = scalar_select %p29, %s31, %s22
      %p33 = scmp.ge.s32.totalorder %s32, 2
      %s34 = scalar_select %p33, 0, %s32
      %s36 = sadd.s32 %s35, 1
      %p39 = scmp.eq.s32.totalorder %s15, 1
      %p40 = scmp.ne.s32.totalorder %s35, %s37
      %p41 = scmp.eq.s32.totalorder %s15, 0
      %p42 = por %p40, %p41
      %p43 = scmp.ne.s32.totalorder %s35, %s37
      %p44 = scmp.eq.s32.totalorder %s20, 1
      %p45 = por %p43, %p44
      %p46 = scmp.ne.s32.totalorder %s37, %s38
      %p47 = scmp.eq.s32.totalorder %s20, 0
      %p48 = por %p46, %p47
      %p49 = scmp.ne.s32.totalorder %s37, %s38
      %p50 = scmp.eq.s32.totalorder %s21, 1
      %p51 = por %p49, %p50
      %p53 = scmp.ne.s32.totalorder %s38, %s52
      %p54 = scmp.eq.s32.totalorder %s21, 0
      %p55 = por %p53, %p54
      %s57 = sadd.s32 %s56, 1
      %p60 = scmp.eq.s32.totalorder %s15, 1
      %p61 = scmp.ne.s32.totalorder %s56, %s58
      %p62 = scmp.eq.s32.totalorder %s15, 0
      %p63 = por %p61, %p62
      %p64 = scmp.ne.s32.totalorder %s56, %s58
      %p65 = scmp.eq.s32.totalorder %s20, 1
      %p66 = por %p64, %p65
      %p67 = scmp.ne.s32.totalorder %s58, %s59
      %p68 = scmp.eq.s32.totalorder %s20, 0
      %p69 = por %p67, %p68
      %p70 = scmp.ne.s32.totalorder %s58, %s59
      %p71 = scmp.eq.s32.totalorder %s21, 1
      %p72 = por %p70, %p71
      %p74 = scmp.ne.s32.totalorder %s59, %s73
      %p75 = scmp.eq.s32.totalorder %s21, 0
      %p76 = por %p74, %p75
      %s77 = sadd.s32 %s22, %s23
      %p78 = scmp.lt.s32.totalorder %s77, 0
      %s79 = scalar_select %p78, %s77, 0
      %s80 = sadd.s32 %s34, %s30
      %p81 = scmp.lt.s32.totalorder %s80, 0
      %s82 = scalar_select %p81, %s80, 0
      %s83 = ssub.s32 %s79, %s82
      %p84 = scmp.eq.s32.totalorder %s83, 0
      %s86 = sadd.s32 %s85, 1
      %s87 = scalar_select %p84, %s85, %s86
      %p90 = pneg %p84
      %p91 = scmp.eq.s32.totalorder %s15, 1
      %p92 = por %p90, %p91
      %p93 = scmp.ne.s32.totalorder %s85, %s88
      %p94 = scmp.eq.s32.totalorder %s15, 0
      %p95 = por %p93, %p94
      %p96 = scmp.ne.s32.totalorder %s85, %s88
      %p97 = scmp.eq.s32.totalorder %s20, 1
      %p98 = por %p96, %p97
      %p99 = scmp.ne.s32.totalorder %s88, %s89
      %p100 = scmp.eq.s32.totalorder %s20, 0
      %p101 = por %p99, %p100
      %p102 = scmp.ne.s32.totalorder %s88, %s89
      %p103 = scmp.eq.s32.totalorder %s21, 1
      %p104 = por %p102, %p103
      %p106 = scmp.ne.s32.totalorder %s89, %s105
      %p107 = scmp.eq.s32.totalorder %s21, 0
      %p108 = por %p106, %p107
      %s109 = sadd.s32 %s22, %s23
      %p110 = scmp.lt.s32.totalorder %s109, 0
      %s111 = scalar_select %p110, %s109, 0
      %s112 = sadd.s32 %s34, %s30
      %p113 = scmp.lt.s32.totalorder %s112, 0
      %s114 = scalar_select %p113, %s112, 0
      %s115 = ssub.s32 %s111, %s114
      %p116 = scmp.eq.s32.totalorder %s115, 0
      %s118 = sadd.s32 %s117, 1
      %s119 = scalar_select %p116, %s117, %s118
      %p122 = pneg %p116
      %p123 = scmp.eq.s32.totalorder %s15, 1
      %p124 = por %p122, %p123
      %p125 = scmp.ne.s32.totalorder %s117, %s120
      %p126 = scmp.eq.s32.totalorder %s15, 0
      %p127 = por %p125, %p126
      %p128 = scmp.ne.s32.totalorder %s117, %s120
      %p129 = scmp.eq.s32.totalorder %s20, 1
      %p130 = por %p128, %p129
      %p131 = scmp.ne.s32.totalorder %s120, %s121
      %p132 = scmp.eq.s32.totalorder %s20, 0
      %p133 = por %p131, %p132
      %p134 = scmp.ne.s32.totalorder %s120, %s121
      %p135 = scmp.eq.s32.totalorder %s21, 1
      %p136 = por %p134, %p135
      %p138 = scmp.ne.s32.totalorder %s121, %s137
      %p139 = scmp.eq.s32.totalorder %s21, 0
      %p140 = por %p138, %p139
      %s141 = ssub.s32 %s22, %s34
      %p142 = scmp.eq.s32.totalorder %s141, 0
      %s144 = sadd.s32 %s143, 1
      %s145 = scalar_select %p142, %s143, %s144
      %p148 = pneg %p142
      %p149 = scmp.eq.s32.totalorder %s15, 1
      %p150 = por %p148, %p149
      %p151 = scmp.ne.s32.totalorder %s143, %s146
      %p152 = scmp.eq.s32.totalorder %s15, 0
      %p153 = por %p151, %p152
      %p154 = scmp.ne.s32.totalorder %s143, %s146
      %p155 = scmp.eq.s32.totalorder %s20, 1
      %p156 = por %p154, %p155
      %p157 = scmp.ne.s32.totalorder %s146, %s147
      %p158 = scmp.eq.s32.totalorder %s20, 0
      %p159 = por %p157, %p158
      %p160 = scmp.ne.s32.totalorder %s146, %s147
      %p161 = scmp.eq.s32.totalorder %s21, 1
      %p162 = por %p160, %p161
      %p164 = scmp.ne.s32.totalorder %s147, %s163
      %p165 = scmp.eq.s32.totalorder %s21, 0
      %p166 = por %p164, %p165
      %p167 = scmp.le.s32.totalorder 1, %s15
      %p168 = scmp.lt.s32.totalorder %s15, 3
      %p169 = pnand %p167, %p168
      %p170 = pneg %p169
      // Predicated region
      $region9: #{tpu_custom_call.1} parent=5 // pred_check
        _
      $region10: #{tpu_custom_call.1} parent=5 // pred_check_branch
        %172 = sbr.rel (%p169) target = $region12
      $region11: #{tpu_custom_call.1} parent=5 // pred_region
        %s173 = ssub.s32 %s15, 1
        // Predicated region
        $region13: #{tpu_custom_call.1} parent=11 // pred_check
          %p174 = pneg %p48
        $region14: #{tpu_custom_call.1} parent=11 // pred_check_branch
          %176 = sbr.rel (%p174) target = $region16
        $region15: #{tpu_custom_call.1} parent=11 // pred_region
          %s178 = ssub.s32 256, 256
          %179 = vsyncadd [#allocation4], %s178
          %s181 = sshll.u32 [#allocation3], 4
          %s182 = int_to_ptr.vmem [resolvable:$true] %s181
          %184 = dma.hbm_to_vmem [thread:$0]  %s0, 256, %s182, [#allocation4]
        $region16: #{tpu_custom_call.1} parent=11 // pred_fallthru
          _
        // Predicated region
        $region17: #{tpu_custom_call.1} parent=11 // pred_check
          %p185 = pneg %p69
        $region18: #{tpu_custom_call.1} parent=11 // pred_check_branch
          %187 = sbr.rel (%p185) target = $region20
        $region19: #{tpu_custom_call.1} parent=11 // pred_region
          %s189 = ssub.s32 256, 256
          %190 = vsyncadd [#allocation7], %s189
          %s192 = sshll.u32 [#allocation6], 4
          %s193 = int_to_ptr.vmem [resolvable:$true] %s192
          %195 = dma.hbm_to_vmem [thread:$0]  %s1, 256, %s193, [#allocation7]
        $region20: #{tpu_custom_call.1} parent=11 // pred_fallthru
          _
      $region12: #{tpu_custom_call.1} parent=5 // pred_fallthru
        _
      %p196 = scmp.lt.s32.totalorder %s15, 2
      // Predicated region
      $region21: #{tpu_custom_call.1} parent=5 // pred_check
        %p197 = pneg %p196
      $region22: #{tpu_custom_call.1} parent=5 // pred_check_branch
        %199 = sbr.rel (%p197) target = $region24
      $region23: #{tpu_custom_call.1} parent=5 // pred_region
        // Predicated region
        $region25: #{tpu_custom_call.1} parent=23 // pred_check
          %p200 = pneg %p95
        $region26: #{tpu_custom_call.1} parent=23 // pred_check_branch
          %202 = sbr.rel (%p200) target = $region28
        $region27: #{tpu_custom_call.1} parent=23 // pred_region
          %s203 = sand.u32 %s15, 1
          %s204 = scalar_lea.sflag [#allocation4], %s203
          %s205 = sand.u32 %s85, 1
          %s206 = smul.addr %s205, 16
          %s207 = scalar_lea.vmem [#allocation8], %s206
          %s208 = sadd.s32 %s22, %s23
          %p209 = scmp.lt.s32.totalorder %s208, 0
          %s210 = scalar_select %p209, %s208, 0
          %s212 = ssub.s32 256, 256
          %213 = vsyncadd %s204, %s212
          %s214 = smul.addr %s210, 2
          %s215 = smul.addr %s214, 128
          %s216 = scalar_lea.hbm %s2, %s215
          %s218 = sshll.u32 %s207, 4
          %s219 = int_to_ptr.vmem [resolvable:$true] %s218
          %221 = dma.hbm_to_vmem [thread:$0]  %s216, 256, %s219, %s204
        $region28: #{tpu_custom_call.1} parent=23 // pred_fallthru
          _
        // Predicated region
        $region29: #{tpu_custom_call.1} parent=23 // pred_check
          %p222 = pneg %p127
        $region30: #{tpu_custom_call.1} parent=23 // pred_check_branch
          %224 = sbr.rel (%p222) target = $region32
        $region31: #{tpu_custom_call.1} parent=23 // pred_region
          %s225 = sand.u32 %s15, 1
          %s226 = scalar_lea.sflag [#allocation4], %s225
          %s227 = sand.u32 %s117, 1
          %s228 = smul.addr %s227, 16
          %s229 = scalar_lea.vmem [#allocation9], %s228
          %s230 = sadd.s32 %s22, %s23
          %p231 = scmp.lt.s32.totalorder %s230, 0
          %s232 = scalar_select %p231, %s230, 0
          %s234 = ssub.s32 256, 256
          %235 = vsyncadd %s226, %s234
          %s236 = smul.addr %s232, 2
          %s237 = smul.addr %s236, 128
          %s238 = scalar_lea.hbm %s3, %s237
          %s240 = sshll.u32 %s229, 4
          %s241 = int_to_ptr.vmem [resolvable:$true] %s240
          %243 = dma.hbm_to_vmem [thread:$0]  %s238, 256, %s241, %s226
        $region32: #{tpu_custom_call.1} parent=23 // pred_fallthru
          _
      $region24: #{tpu_custom_call.1} parent=5 // pred_fallthru
        _
      %p244 = scmp.le.s32.totalorder 1, %s15
      %p245 = scmp.lt.s32.totalorder %s15, 3
      %p246 = pnand %p244, %p245
      %p247 = pneg %p246
      // Predicated region
      $region33: #{tpu_custom_call.1} parent=5 // pred_check
        _
      $region34: #{tpu_custom_call.1} parent=5 // pred_check_branch
        %249 = sbr.rel (%p246) target = $region36
      $region35: #{tpu_custom_call.1} parent=5 // pred_region
        %s250 = ssub.s32 %s15, 1
        // Predicated region
        $region37: #{tpu_custom_call.1} parent=35 // pred_check
          %p251 = pneg %p48
        $region38: #{tpu_custom_call.1} parent=35 // pred_check_branch
          %253 = sbr.rel (%p251) target = $region40
        $region39: #{tpu_custom_call.1} parent=35 // pred_region
          %254 = dma.done [#allocation4], 256
        $region40: #{tpu_custom_call.1} parent=35 // pred_fallthru
          _
        // Predicated region
        $region41: #{tpu_custom_call.1} parent=35 // pred_check
          %p255 = pneg %p69
        $region42: #{tpu_custom_call.1} parent=35 // pred_check_branch
          %257 = sbr.rel (%p255) target = $region44
        $region43: #{tpu_custom_call.1} parent=35 // pred_region
          %258 = dma.done [#allocation7], 256
        $region44: #{tpu_custom_call.1} parent=35 // pred_fallthru
          _
        %s259 = sand.u32 %s20, 1
        %s260 = scalar_lea.sflag [#allocation4], %s259
        %s261 = sand.u32 %s88, 1
        %s262 = smul.addr %s261, 16
        %s263 = scalar_lea.vmem [#allocation8], %s262
        // Predicated region
        $region45: #{tpu_custom_call.1} parent=35 // pred_check
          %p264 = pneg %p101
        $region46: #{tpu_custom_call.1} parent=35 // pred_check_branch
          %266 = sbr.rel (%p264) target = $region48
        $region47: #{tpu_custom_call.1} parent=35 // pred_region
          %267 = dma.done %s260, 256
        $region48: #{tpu_custom_call.1} parent=35 // pred_fallthru
          _
        %s268 = sand.u32 %s20, 1
        %s269 = scalar_lea.sflag [#allocation4], %s268
        %s270 = sand.u32 %s120, 1
        %s271 = smul.addr %s270, 16
        %s272 = scalar_lea.vmem [#allocation9], %s271
        // Predicated region
        $region49: #{tpu_custom_call.1} parent=35 // pred_check
          %p273 = pneg %p133
        $region50: #{tpu_custom_call.1} parent=35 // pred_check_branch
          %275 = sbr.rel (%p273) target = $region52
        $region51: #{tpu_custom_call.1} parent=35 // pred_region
          %276 = dma.done %s269, 256
        $region52: #{tpu_custom_call.1} parent=35 // pred_fallthru
          _
        %p277 = pneg %p48
        %p278 = pneg %p45
        %p279 = pneg %p69
        %p280 = pneg %p66
        %s281 = sand.u32 %s20, 1
        %s282 = scalar_lea.sflag [#allocation4], %s281
        %s283 = sand.u32 %s88, 1
        %s284 = smul.addr %s283, 16
        %s285 = scalar_lea.vmem [#allocation8], %s284
        %p286 = pneg %p101
        %p287 = pneg %p98
        %s288 = sand.u32 %s20, 1
        %s289 = scalar_lea.sflag [#allocation4], %s288
        %s290 = sand.u32 %s120, 1
        %s291 = smul.addr %s290, 16
        %s292 = scalar_lea.vmem [#allocation9], %s291
        %p293 = pneg %p133
        %p294 = pneg %p130
        %p295 = pneg %p159
        %p296 = pneg %p156
        %s297 = sand.u32 %s146, 1
        %s298 = scalar_lea.sflag [#allocation5], %s297
        %s299 = sand.u32 %s146, 1
        %s300 = smul.addr %s299, 8
        %s301 = scalar_lea.vmem [#allocation10], %s300
        %s302 = sadd.s32 %s24, %s25
        %p303 = scmp.lt.s32.totalorder %s302, 0
        %s304 = scalar_select %p303, %s302, 0
        %s305 = sadd.s32 %s24, %s25
        %p306 = scmp.lt.s32.totalorder %s305, 0
        %s307 = scalar_select %p306, %s305, 0
        %s308 = sadd.s32 %s24, %s25
        %p309 = scmp.eq.s32.totalorder %s25, 0
        // Predicated region
        $region53: #{tpu_custom_call.1} parent=35 // pred_check
          %p310 = pneg %p309
        $region54: #{tpu_custom_call.1} parent=35 // pred_check_branch
          %312 = sbr.rel (%p310) target = $region56
        $region55: #{tpu_custom_call.1} parent=35 // pred_region
          %313 = vst [vmem:[#allocation2] sm:$0xff] 0.0
          %314 = vst [vmem:[#allocation2 + $0x8] sm:$0xff] 0.0
        $region56: #{tpu_custom_call.1} parent=35 // pred_fallthru
          _
        %p315 = scmp.lt.s32.totalorder %s308, 1
        // Predicated region
        $region57: #{tpu_custom_call.1} parent=35 // pred_check
          %p316 = pneg %p315
        $region58: #{tpu_custom_call.1} parent=35 // pred_check_branch
          %318 = sbr.rel (%p316) target = $region60
        $region59: #{tpu_custom_call.1} parent=35 // pred_region
          %v319 = vld [vmem:[%s263] sm:$0xff]
          %v320 = vld [vmem:[%s263 + $0x8] sm:$0xff]
          %v321 = vld [vmem:[%s272] sm:$0xff]
          %v322 = vld [vmem:[%s272 + $0x8] sm:$0xff]
          %323 = vrot.lane.b32.xlu0 %v319, 127
          %v324 = vpop.permute.xlu0 %323
          %325 = vrot.lane.b32.xlu0 %v320, 127
          %v326 = vpop.permute.xlu0 %325
          %v327 = vlaneseq
          %v328 = vand.u32 %v327, 127
          %vm329 = vcmp.lt.s32.totalorder %v328, 127
          %v330 = vsel %vm329, %v324, %v326
          %v331 = vsel %vm329, %v326, %v324
          %332 = vrot.lane.b32.xlu0 %v319, 112
          %v333 = vpop.permute.xlu0 %332
          %334 = vrot.lane.b32.xlu0 %v320, 112
          %v335 = vpop.permute.xlu0 %334
          %vm336 = vcmp.lt.s32.totalorder %v328, 112
          %v337 = vsel %vm336, %v333, %v335
          %v338 = vsel %vm336, %v335, %v333
          %v339 = vsub.f32 %v319, %v321
          %v340 = vsub.f32 %v320, %v322
          %v341 = vand.u32 2147483647, %v339
          %v342 = vand.u32 2147483647, %v340
          %v343 = vsub.f32 %v330, %v319
          %v344 = vsub.f32 %v331, %v320
          %v345 = vand.u32 2147483647, %v343
          %v346 = vand.u32 2147483647, %v344
          %v347 = vsub.f32 %v337, %v319
          %v348 = vsub.f32 %v338, %v320
          %v349 = vand.u32 2147483647, %v347
          %v350 = vand.u32 2147483647, %v348
          %v351 = vadd.f32 %v341, 0.0
          %v352 = vadd.f32 %v342, 0.0
          %v353 = vadd.f32 %v345, 0.0
          %v354 = vadd.f32 %v346, 0.0
          %v355 = vadd.f32 %v349, 0.0
          %v356 = vadd.f32 %v350, 0.0
          %v357 = vld [vmem:[#allocation2] sm:$0xff]
          %v358 = vld [vmem:[#allocation2 + $0x8] sm:$0xff]
          %v359 = vld [vmem:[#allocation3] sm:$0xff]
          %v360 = vld [vmem:[#allocation3 + $0x8] sm:$0xff]
          %v361 = vmul.f32 %v359, %v353
          %v362 = vmul.f32 %v360, %v354
          %v363 = vadd.f32 %v351, %v361
          %v364 = vadd.f32 %v352, %v362
          %v365 = vld [vmem:[#allocation6] sm:$0xff]
          %v366 = vld [vmem:[#allocation6 + $0x8] sm:$0xff]
          %v367 = vmul.f32 %v365, %v355
          %v368 = vmul.f32 %v366, %v356
          %v369 = vadd.f32 %v363, %v367
          %v370 = vadd.f32 %v364, %v368
          %v371 = vadd.f32 %v357, %v369
          %v372 = vadd.f32 %v358, %v370
          %373 = vst [vmem:[#allocation2] sm:$0xff] %v371
          %374 = vst [vmem:[#allocation2 + $0x8] sm:$0xff] %v372
        $region60: #{tpu_custom_call.1} parent=35 // pred_fallthru
          _
        // Predicated region
        $region61: #{tpu_custom_call.1} parent=35 // pred_check
          %p375 = pneg %p309
        $region62: #{tpu_custom_call.1} parent=35 // pred_check_branch
          %377 = sbr.rel (%p375) target = $region64
        $region63: #{tpu_custom_call.1} parent=35 // pred_region
          %v378 = vld [vmem:[#allocation2] sm:$0xff]
          %v379 = vld [vmem:[#allocation2 + $0x8] sm:$0xff]
          %v380 = vadd.f32 %v378, %v379
          %381 = vadd.xlane.f32.xlu0 %v380
          %v382 = vpop.xlane.xlu0 %381
          %v383 = vrot.slane %v382, 4
          %v384 = vadd.f32 %v382, %v383
          %v385 = vrot.slane %v384, 2
          %v386 = vadd.f32 %v384, %v385
          %v387 = vrot.slane %v386, 1
          %v388 = vadd.f32 %v386, %v387
          %s389 = vtos %v388
          %v390 = vstv %s389
          %391 = vst [vmem:[%s301] sm:$0xff] %v390
        $region64: #{tpu_custom_call.1} parent=35 // pred_fallthru
          _
        %s392 = sand.u32 %s146, 1
        %s393 = scalar_lea.sflag [#allocation5], %s392
        %s394 = sand.u32 %s146, 1
        %s395 = smul.addr %s394, 8
        %s396 = scalar_lea.vmem [#allocation10], %s395
        // Predicated region
        $region65: #{tpu_custom_call.1} parent=35 // pred_check
          %p397 = pneg %p156
        $region66: #{tpu_custom_call.1} parent=35 // pred_check_branch
          %399 = sbr.rel (%p397) target = $region68
        $region67: #{tpu_custom_call.1} parent=35 // pred_region
          %s401 = ssub.s32 128, 128
          %402 = vsyncadd %s393, %s401
          %s403 = smul.addr %s24, 128
          %s404 = scalar_lea.hbm %s4, %s403
          %s406 = sshll.u32 %s396, 4
          %s407 = int_to_ptr.vmem [resolvable:$true] %s406
          %409 = dma.vmem_to_hbm [thread:$0]  %s407, 128, %s404, %s393
        $region68: #{tpu_custom_call.1} parent=35 // pred_fallthru
          _
      $region36: #{tpu_custom_call.1} parent=5 // pred_fallthru
        _
      %p410 = scmp.le.s32.totalorder 2, %s15
      // Predicated region
      $region69: #{tpu_custom_call.1} parent=5 // pred_check
        %p411 = pneg %p410
      $region70: #{tpu_custom_call.1} parent=5 // pred_check_branch
        %413 = sbr.rel (%p411) target = $region72
      $region71: #{tpu_custom_call.1} parent=5 // pred_region
        %s414 = ssub.s32 %s15, 2
        // Predicated region
        $region73: #{tpu_custom_call.1} parent=71 // pred_check
          %p415 = pneg %p162
        $region74: #{tpu_custom_call.1} parent=71 // pred_check_branch
          %417 = sbr.rel (%p415) target = $region76
        $region75: #{tpu_custom_call.1} parent=71 // pred_region
          %s418 = sand.u32 %s147, 1
          %s419 = scalar_lea.sflag [#allocation5], %s418
          %s420 = sand.u32 %s147, 1
          %s421 = smul.addr %s420, 8
          %s422 = scalar_lea.vmem [#allocation10], %s421
          %423 = dma.done %s419, 128
        $region76: #{tpu_custom_call.1} parent=71 // pred_fallthru
          _
      $region72: #{tpu_custom_call.1} parent=5 // pred_fallthru
        _
    $region6: #{tpu_custom_call.1} parent=1 // loop_footer
      %s19 = sadd.s32 1, %s15
    $region7: #{tpu_custom_call.1} parent=1 // loop_footer_branch
      %14 = sbr.rel target = $region3
    $region8: #{tpu_custom_call.1} parent=1 // loop_exit
      _
    %424 = vsyncpa [#allocation4], 1
    %s425 = scalar_lea.sflag [#allocation4], 1
    %426 = vsyncpa %s425, 1
    %427 = vsyncpa [#allocation7], 1
    %428 = vsyncpa [#allocation5], 1
    %s429 = scalar_lea.sflag [#allocation5], 1
    %430 = vsyncpa %s429, 1

</llo_original>
